<compile_context>
chip_gen: v5e
topology: v5e:2x2
jax: 0.10.0
libtpu: 0.0.40
codegen_flags: <defaults>
</compile_context>

<pallas_src>
import math

import jax
import jax.numpy as jnp
from jax.experimental import pallas as pl
from jax.experimental.pallas import tpu as pltpu


def _round_up(n: int, m: int) -> int:
    return ((n + m - 1) // m) * m


def _make_scl_kernel(true_b: int, tb: int, return_mato: bool):
    def body(x_ref, c_ref, lab_ref, mato_ref, part_ref):
        i = pl.program_id(0)

        x = x_ref[...].astype(jnp.float32)       # (TB, D)  (bf16 inputs upcast)
        c = c_ref[...].astype(jnp.float32)       # (1, D)
        lab = lab_ref[...]                       # (TB, 1) f32 0/1

        diff = x - c                             # broadcast center over batch
        diff2 = diff * diff                      # == |eud_mato| (square >= 0)
        if return_mato:
            mato_ref[...] = diff2.astype(mato_ref.dtype)

        # Per-row Euclidean distance, (TB, 1).
        eud = jnp.sqrt(jnp.sum(diff2, axis=1, keepdims=True))

        # Mask padded rows of the (possibly partial) last tile.
        row = jax.lax.broadcasted_iota(jnp.int32, (tb, 1), 0)
        valid = ((i * tb + row) < true_b).astype(jnp.float32)   # (TB, 1)
        lab = lab * valid

        real_c = jnp.sum(lab)
        # clip floor of 1e-12 on zeroed rows matches the PyTorch clamp exactly;
        # padded rows are excluded entirely (multiplied by valid == 0).
        dreal = jnp.sum(jnp.clip(eud * lab, 1e-12, 1e12) * valid)
        dfake = jnp.sum(jnp.clip(eud * (1.0 - lab), 1e-12, 1e12) * valid)

        # Lane-dense per-tile partials: lane 0 = real_count, 1 = dist_real,
        # 2 = dist_fake (broadcast over the 8 sublanes; wrapper reads row 0).
        lane = jax.lax.broadcasted_iota(jnp.int32, part_ref.shape, 2)
        part_ref[...] = (
            jnp.where(lane == 0, real_c, 0.0)
            + jnp.where(lane == 1, dreal, 0.0)
            + jnp.where(lane == 2, dfake, 0.0)
        )

    if return_mato:
        def kernel(x_ref, c_ref, lab_ref, mato_ref, part_ref):
            body(x_ref, c_ref, lab_ref, mato_ref, part_ref)
    else:
        def kernel(x_ref, c_ref, lab_ref, part_ref):
            body(x_ref, c_ref, lab_ref, None, part_ref)
    return kernel


def single_center_loss(x, labels, center, m=0.3, *, return_mato=True, tile_b=None):
    """x: (B, D) f32/bf16, labels: (B,) 0/1, center: (D,) f32.

    Returns (loss, |eud_mato|) like the PyTorch module; if return_mato=False
    the (B, D) residual tensor is not materialized (returns (loss, None)).
    """
    B, D = x.shape
    margin = float(m) * math.sqrt(float(D))

    # Batch tile: largest-reasonable, multiple of 8 (f32 sublane), capped so a
    # double-buffered (x + mato) tile stays well inside the 32 MiB scoped VMEM
    # default on every generation (incl. v7x's smaller physical VMEM).
    if tile_b is None:
        tile_b = 512
    TB = _round_up(min(tile_b, _round_up(B, 8)), 8)
    B_pad = _round_up(B, TB)
    num_tiles = B_pad // TB

    if x.dtype not in (jnp.float32, jnp.bfloat16):
        x = x.astype(jnp.float32)
    lab = labels.astype(jnp.float32).reshape(B, 1)
    if B_pad != B:
        x = jnp.pad(x, ((0, B_pad - B), (0, 0)))
        lab = jnp.pad(lab, ((0, B_pad - B), (0, 0)))
    c = center.astype(jnp.float32).reshape(1, D)

    kernel = _make_scl_kernel(B, TB, return_mato)

    in_specs = [
        pl.BlockSpec((TB, D), lambda i: (i, 0)),     # x tile
        pl.BlockSpec((1, D), lambda i: (0, 0)),      # center (resident)
        pl.BlockSpec((TB, 1), lambda i: (i, 0)),     # labels tile
    ]
    part_shape = jax.ShapeDtypeStruct((num_tiles, 8, 128), jnp.float32)
    part_spec = pl.BlockSpec((1, 8, 128), lambda i: (i, 0, 0))

    if return_mato:
        out_shape = (jax.ShapeDtypeStruct((B_pad, D), jnp.float32), part_shape)
        out_specs = (pl.BlockSpec((TB, D), lambda i: (i, 0)), part_spec)
    else:
        out_shape = (part_shape,)
        out_specs = (part_spec,)

    outs = pl.pallas_call(
        kernel,
        grid=(num_tiles,),
        out_shape=out_shape,
        in_specs=in_specs,
        out_specs=out_specs,
        compiler_params=pltpu.CompilerParams(
            dimension_semantics=("parallel",),
        ),
    )(x, c, lab)

    if return_mato:
        mato_pad, parts = outs
        mato = mato_pad[:B]
    else:
        (parts,) = outs
        mato = None

    # Tiny cross-tile reduction + final scalar math in plain JAX.
    real_count = jnp.sum(parts[:, 0, 0])
    dist_real = jnp.sum(parts[:, 0, 1])
    dist_fake = jnp.sum(parts[:, 0, 2])
    bsz = jnp.float32(B)
    dist_real = jnp.where(real_count != 0.0, dist_real / real_count, dist_real)
    dist_fake = jnp.where(real_count != bsz, dist_fake / (bsz - real_count), dist_fake)
    max_margin = jnp.maximum(dist_real - dist_fake + jnp.float32(margin), 0.0)
    loss = dist_real + max_margin
    return loss, mato


def _reference(x, labels, center, m=0.3):
    """Pure-JAX reference mirroring the PyTorch forward exactly."""
    B, D = x.shape
    margin = m * jnp.sqrt(jnp.float32(D))
    lab = labels.astype(jnp.float32).reshape(B, 1)
    mato = (x - center[None, :]) ** 2
    eud = jnp.sqrt(jnp.sum(mato, axis=1, keepdims=True))
    real_count = jnp.sum(lab)
    dist_real = jnp.sum(jnp.clip(eud * lab, 1e-12, 1e12))
    dist_fake = jnp.sum(jnp.clip(eud * (1.0 - lab), 1e-12, 1e12))
    dist_real = jnp.where(real_count != 0, dist_real / real_count, dist_real)
    dist_fake = jnp.where(real_count != B, dist_fake / (B - real_count), dist_fake)
    max_margin = jnp.maximum(dist_real - dist_fake + margin, 0.0)
    return dist_real + max_margin, jnp.abs(mato)


if __name__ == "__main__":
    # B deliberately not a multiple of 8 to exercise the padded-tail masking;
    # D=256 is the module default.
    B, D = 10, 256
    key = jax.random.PRNGKey(0)
    kx, kc, kl = jax.random.split(key, 3)

    x = jax.random.normal(kx, (B, D), dtype=jnp.float32)
    # Deterministic "randn" center parameter (synthetic init, no checkpoint).
    center = jax.random.normal(kc, (D,), dtype=jnp.float32)
    labels = jax.random.bernoulli(kl, 0.5, (B,)).astype(jnp.int32)

    loss, mato = single_center_loss(x, labels, center, m=0.3)
    loss = jax.block_until_ready(loss)
    mato = jax.block_until_ready(mato)

    ref_loss, ref_mato = _reference(x, labels, center, m=0.3)
    assert jnp.allclose(loss, ref_loss, rtol=1e-5, atol=1e-5), (loss, ref_loss)
    assert jnp.allclose(mato, ref_mato, rtol=1e-5, atol=1e-5)

    print("KERNEL_OK")
</pallas_src>

<mosaic_0001>
module attributes {stable_mosaic.version = 11 : i64} {
  func.func @kernel(%arg0: i32, %arg1: memref<16x256xf32, #tpu.memory_space<vmem>>, %arg2: memref<1x256xf32, #tpu.memory_space<vmem>>, %arg3: memref<16x1xf32, #tpu.memory_space<vmem>>, %arg4: memref<16x256xf32, #tpu.memory_space<vmem>>, %arg5: memref<1x8x128xf32, #tpu.memory_space<vmem>>) attributes {dimension_semantics = [#tpu.dimension_semantics<parallel>], iteration_bounds = array<i64: 1>, scalar_prefetch = 0 : i64, scratch_operands = 0 : i64, tpu.core_type = #tpu.core_type<tc>, window_params = [{transform_indices = @transform_0, window_bounds = array<i64: 16, 256>}, {pipeline_mode = #tpu.pipeline_mode<synchronous>, transform_indices = @transform_1, window_bounds = array<i64: 1, 256>}, {transform_indices = @transform_2, window_bounds = array<i64: 16, 1>}, {transform_indices = @transform_3, window_bounds = array<i64: 16, 256>}, {transform_indices = @transform_4, window_bounds = array<i64: 1, 8, 128>}]} {
    %c0 = arith.constant 0 : index
    %c0_0 = arith.constant 0 : index
    %0 = vector.load %arg1[%c0, %c0_0] : memref<16x256xf32, #tpu.memory_space<vmem>>, vector<16x256xf32>
    %c0_1 = arith.constant 0 : index
    %c0_2 = arith.constant 0 : index
    %1 = vector.load %arg2[%c0_1, %c0_2] : memref<1x256xf32, #tpu.memory_space<vmem>>, vector<1x256xf32>
    %c0_3 = arith.constant 0 : index
    %c0_4 = arith.constant 0 : index
    %2 = vector.load %arg3[%c0_3, %c0_4] : memref<16x1xf32, #tpu.memory_space<vmem>>, vector<16x1xf32>
    %3 = vector.broadcast %1 : vector<1x256xf32> to vector<16x256xf32>
    %4 = arith.subf %0, %3 : vector<16x256xf32>
    %5 = arith.mulf %4, %4 : vector<16x256xf32>
    %c0_5 = arith.constant 0 : index
    %c0_6 = arith.constant 0 : index
    %6 = vector.load %arg4[%c0_5, %c0_6] : memref<16x256xf32, #tpu.memory_space<vmem>>, vector<16x256xf32>
    tpu.vector_store %arg4[%c0_5, %c0_6], %5 {strides = array<i32>} : memref<16x256xf32, #tpu.memory_space<vmem>>, vector<16x256xf32>,
    %cst = arith.constant dense<0.000000e+00> : vector<16xf32>
    %7 = vector.multi_reduction <add>, %5, %cst [1] : vector<16x256xf32> to vector<16xf32>
    %8 = vector.shape_cast %7 : vector<16xf32> to vector<16x1xf32>
    %9 = math.sqrt %8 : vector<16x1xf32>
    %10 = tpu.iota {dimensions = array<i32: 0>} : vector<16x1xi32>
    %c16_i32 = arith.constant 16 : i32
    %11 = arith.muli %arg0, %c16_i32 : i32
    %12 = vector.broadcast %11 : i32 to vector<16x1xi32>
    %13 = arith.addi %12, %10 : vector<16x1xi32>
    %c10_i32 = arith.constant 10 : i32
    %14 = vector.broadcast %c10_i32 : i32 to vector<16x1xi32>
    %15 = arith.cmpi slt, %13, %14 : vector<16x1xi32>
    %16 = arith.extui %15 : vector<16x1xi1> to vector<16x1xi32>
    %17 = arith.sitofp %16 : vector<16x1xi32> to vector<16x1xf32>
    %18 = arith.mulf %2, %17 : vector<16x1xf32>
    %19 = vector.shape_cast %18 : vector<16x1xf32> to vector<1x16x1xf32>
    %cst_7 = arith.constant dense<0.000000e+00> : vector<1xf32>
    %20 = vector.multi_reduction <add>, %19, %cst_7 [1, 2] : vector<1x16x1xf32> to vector<1xf32>
    %21 = vector.shape_cast %20 : vector<1xf32> to vector<1x1x1xf32>
    %22 = vector.extract %21[0, 0, 0] : f32 from vector<1x1x1xf32>
    %23 = arith.mulf %9, %18 : vector<16x1xf32>
    %cst_8 = arith.constant 9.99999996E-13 : f32
    %cst_9 = arith.constant 9.99999995E+11 : f32
    %24 = vector.broadcast %cst_8 : f32 to vector<16x1xf32>
    %25 = arith.maximumf %24, %23 : vector<16x1xf32>
    %26 = vector.broadcast %cst_9 : f32 to vector<16x1xf32>
    %27 = arith.minimumf %26, %25 : vector<16x1xf32>
    %28 = arith.mulf %27, %17 : vector<16x1xf32>
    %29 = vector.shape_cast %28 : vector<16x1xf32> to vector<1x16x1xf32>
    %cst_10 = arith.constant dense<0.000000e+00> : vector<1xf32>
    %30 = vector.multi_reduction <add>, %29, %cst_10 [1, 2] : vector<1x16x1xf32> to vector<1xf32>
    %31 = vector.shape_cast %30 : vector<1xf32> to vector<1x1x1xf32>
    %32 = vector.extract %31[0, 0, 0] : f32 from vector<1x1x1xf32>
    %cst_11 = arith.constant 1.000000e+00 : f32
    %33 = vector.broadcast %cst_11 : f32 to vector<16x1xf32>
    %34 = arith.subf %33, %18 : vector<16x1xf32>
    %35 = arith.mulf %9, %34 : vector<16x1xf32>
    %cst_12 = arith.constant 9.99999996E-13 : f32
    %cst_13 = arith.constant 9.99999995E+11 : f32
    %36 = vector.broadcast %cst_12 : f32 to vector<16x1xf32>
    %37 = arith.maximumf %36, %35 : vector<16x1xf32>
    %38 = vector.broadcast %cst_13 : f32 to vector<16x1xf32>
    %39 = arith.minimumf %38, %37 : vector<16x1xf32>
    %40 = arith.mulf %39, %17 : vector<16x1xf32>
    %41 = vector.shape_cast %40 : vector<16x1xf32> to vector<1x16x1xf32>
    %cst_14 = arith.constant dense<0.000000e+00> : vector<1xf32>
    %42 = vector.multi_reduction <add>, %41, %cst_14 [1, 2] : vector<1x16x1xf32> to vector<1xf32>
    %43 = vector.shape_cast %42 : vector<1xf32> to vector<1x1x1xf32>
    %44 = vector.extract %43[0, 0, 0] : f32 from vector<1x1x1xf32>
    %45 = tpu.iota {dimensions = array<i32: 2>} : vector<1x8x128xi32>
    %c0_i32 = arith.constant 0 : i32
    %46 = vector.broadcast %c0_i32 : i32 to vector<1x8x128xi32>
    %47 = arith.cmpi eq, %45, %46 : vector<1x8x128xi32>
    %cst_15 = arith.constant 0.000000e+00 : f32
    %48 = vector.broadcast %22 : f32 to vector<1x8x128xf32>
    %49 = vector.broadcast %cst_15 : f32 to vector<1x8x128xf32>
    %50 = arith.select %47, %48, %49 : vector<1x8x128xi1>, vector<1x8x128xf32>
    %c1_i32 = arith.constant 1 : i32
    %51 = vector.broadcast %c1_i32 : i32 to vector<1x8x128xi32>
    %52 = arith.cmpi eq, %45, %51 : vector<1x8x128xi32>
    %cst_16 = arith.constant 0.000000e+00 : f32
    %53 = vector.broadcast %32 : f32 to vector<1x8x128xf32>
    %54 = vector.broadcast %cst_16 : f32 to vector<1x8x128xf32>
    %55 = arith.select %52, %53, %54 : vector<1x8x128xi1>, vector<1x8x128xf32>
    %56 = arith.addf %50, %55 : vector<1x8x128xf32>
    %c2_i32 = arith.constant 2 : i32
    %57 = vector.broadcast %c2_i32 : i32 to vector<1x8x128xi32>
    %58 = arith.cmpi eq, %45, %57 : vector<1x8x128xi32>
    %cst_17 = arith.constant 0.000000e+00 : f32
    %59 = vector.broadcast %44 : f32 to vector<1x8x128xf32>
    %60 = vector.broadcast %cst_17 : f32 to vector<1x8x128xf32>
    %61 = arith.select %58, %59, %60 : vector<1x8x128xi1>, vector<1x8x128xf32>
    %62 = arith.addf %56, %61 : vector<1x8x128xf32>
    %c0_18 = arith.constant 0 : index
    %c0_19 = arith.constant 0 : index
    %c0_20 = arith.constant 0 : index
    %63 = vector.load %arg5[%c0_18, %c0_19, %c0_20] : memref<1x8x128xf32, #tpu.memory_space<vmem>>, vector<1x8x128xf32>
    tpu.vector_store %arg5[%c0_18, %c0_19, %c0_20], %62 {strides = array<i32>} : memref<1x8x128xf32, #tpu.memory_space<vmem>>, vector<1x8x128xf32>,
    return
  }
  func.func @transform_0(%arg0: i32) -> (i32, i32) {
    %c0_i32 = arith.constant 0 : i32
    %c0_i32_0 = arith.constant 0 : i32
    return %arg0, %c0_i32 : i32, i32
  }
  func.func @transform_1(%arg0: i32) -> (i32, i32) {
    %c0_i32 = arith.constant 0 : i32
    %c0_i32_0 = arith.constant 0 : i32
    %c0_i32_1 = arith.constant 0 : i32
    return %c0_i32, %c0_i32_0 : i32, i32
  }
  func.func @transform_2(%arg0: i32) -> (i32, i32) {
    %c0_i32 = arith.constant 0 : i32
    %c0_i32_0 = arith.constant 0 : i32
    return %arg0, %c0_i32 : i32, i32
  }
  func.func @transform_3(%arg0: i32) -> (i32, i32) {
    %c0_i32 = arith.constant 0 : i32
    %c0_i32_0 = arith.constant 0 : i32
    return %arg0, %c0_i32 : i32, i32
  }
  func.func @transform_4(%arg0: i32) -> (i32, i32, i32) {
    %c0_i32 = arith.constant 0 : i32
    %c0_i32_0 = arith.constant 0 : i32
    %c0_i32_1 = arith.constant 0 : i32
    return %arg0, %c0_i32, %c0_i32_0 : i32, i32, i32
  }
}

</mosaic_0001>

<llo_original>
// kernel: tpu_custom_call.1
$region0: #{tpu_custom_call.1}
  #allocation0 [shape = 'u32[]', space=smem, size = 0x4, offset = 0x4, fixed_abs, tag = 'smem constant byte address 0x4 - core index']
  #allocation1 [shape = 'u32[72,128]{1,0:T(1,128)}', space=vmem, size = 0x9000, scoped, tag = 'internal scratch']
  %s0 = inlined_call_operand.hbm [shape: f32[16,256], index: 0, kind: input, shape index: {}]
  %s1 = inlined_call_operand.vmem [shape: f32[1,256], index: 1, kind: input, shape index: {}]
  %s2 = inlined_call_operand.vmem [shape: f32[16,1], index: 2, kind: input, shape index: {}]
  %s3 = inlined_call_operand.hbm [shape: f32[16,256], index: 3, kind: output, shape index: {0}]
  %s4 = inlined_call_operand.hbm [shape: f32[1,8,128], index: 4, kind: output, shape index: {1}]
  %5 = xla_tuple %s3, %s4
  %s6 = sld [smem:[#allocation0]]
  $region34: #{tpu_custom_call.1} parent=0
    _
  %s8 = ssub.s32 1, %s6
  %s9 = scalar_select 0, %s8, %s6
  $region1: #{tpu_custom_call.1} parent=0
    #allocation2 [shape = 'u8[16384]{0}', space=vmem, size = 0x4000, scoped, tag = 'input window, operand 0, single buffered']
    #allocation3 [shape = 's32[1]{0}', space=sflag, size = 0x4, scoped, tag = 'scoped memory for tpu_custom_call.1']
    #allocation4 [shape = 's32[1]{0}', space=sflag, size = 0x4, scoped, tag = 'scoped memory for tpu_custom_call.1']
    #allocation5 [shape = 'u8[16384]{0}', space=vmem, size = 0x4000, scoped, tag = 'output window, operand 0, single buffered']
    #allocation6 [shape = 'u8[4096]{0}', space=vmem, size = 0x1000, scoped, tag = 'output window, operand 1, single buffered']
    #allocation7 [shape = 's32[1]{0}', space=sflag, size = 0x4, scoped, tag = 'scoped memory for tpu_custom_call.1']
    %10 = vsyncpa [#allocation3], 0
    %11 = vsyncpa [#allocation4], 0
    %12 = vsyncpa [#allocation7], 0
    // Predicated region
    $region2: #{tpu_custom_call.1} parent=1 // pred_check
      _
    $region3: #{tpu_custom_call.1} parent=1 // pred_check_branch
      %14 = sbr.rel (0) target = $region5
    $region4: #{tpu_custom_call.1} parent=1 // pred_region
      %16 = vsyncadd [#allocation3], 0
      %s17 = sshll.u32 %s0, 4
      %s18 = int_to_ptr.hbm [resolvable:$true] %s17
      %s19 = sshll.u32 [#allocation2], 4
      %s20 = int_to_ptr.vmem [resolvable:$true] %s19
      %25 = dma.hbm_to_vmem [thread:$0]  %s18, 512, %s20, [#allocation3], 256, 256, 16
    $region5: #{tpu_custom_call.1} parent=1 // pred_fallthru
      _
    // Predicated region
    $region6: #{tpu_custom_call.1} parent=1 // pred_check
      _
    $region7: #{tpu_custom_call.1} parent=1 // pred_check_branch
      %27 = sbr.rel (0) target = $region9
    $region8: #{tpu_custom_call.1} parent=1 // pred_region
      _
    $region9: #{tpu_custom_call.1} parent=1 // pred_fallthru
      _
    // Predicated region
    $region10: #{tpu_custom_call.1} parent=1 // pred_check
      _
    $region11: #{tpu_custom_call.1} parent=1 // pred_check_branch
      %29 = sbr.rel (0) target = $region13
    $region12: #{tpu_custom_call.1} parent=1 // pred_region
      _
    $region13: #{tpu_custom_call.1} parent=1 // pred_fallthru
      _
    // Predicated region
    $region14: #{tpu_custom_call.1} parent=1 // pred_check
      _
    $region15: #{tpu_custom_call.1} parent=1 // pred_check_branch
      %31 = sbr.rel (0) target = $region17
    $region16: #{tpu_custom_call.1} parent=1 // pred_region
      %33 = dma.done [#allocation3], 512
    $region17: #{tpu_custom_call.1} parent=1 // pred_fallthru
      _
    %v34 = vld [vmem:[#allocation2] sm:$0xff]
    %v35 = vld [vmem:[#allocation2 + $0x8] sm:$0xff]
    %v36 = vld [vmem:[#allocation2 + $0x10] sm:$0xff]
    %v37 = vld [vmem:[#allocation2 + $0x18] sm:$0xff]
    %v38 = vld [vmem:[%s1] sm:$0x3]
    %v39 = vld [vmem:[%s2] sm:$0xff]
    %v40 = vld [vmem:[%s2 + $0x8] sm:$0xff]
    %v42 = vperm.slane %v38, 0
    %v43 = vperm.slane %v38, 1
    %v46 = vsub.f32 %v34, %v42
    %v47 = vsub.f32 %v35, %v43
    %v48 = vsub.f32 %v36, %v42
    %v49 = vsub.f32 %v37, %v43
    %v50 = vmul.f32 %v46, %v46
    %v51 = vmul.f32 %v47, %v47
    %v52 = vmul.f32 %v48, %v48
    %v53 = vmul.f32 %v49, %v49
    %54 = vst [vmem:[#allocation5] sm:$0xff] %v50
    %55 = vst [vmem:[#allocation5 + $0x8] sm:$0xff] %v51
    %56 = vst [vmem:[#allocation5 + $0x10] sm:$0xff] %v52
    %57 = vst [vmem:[#allocation5 + $0x18] sm:$0xff] %v53
    %v58 = vadd.f32 %v50, %v51
    %59 = vadd.xlane.f32.xlu0 %v58
    %v60 = vpop.xlane.xlu0 %59
    %v61 = vadd.f32 %v52, %v53
    %62 = vadd.xlane.f32.xlu0 %v61
    %v63 = vpop.xlane.xlu0 %62
    %v64 = vrsqrt.pop %v60
    %v65 = vmul.f32 %v64, %v60
    %v66 = vmul.f32 %v65, %v64
    %v67 = vmul.f32 0.5, %v66
    %v68 = vsub.f32 1.5, %v67
    %v69 = vmul.f32 %v64, %v68
    %v70 = vmul.f32 %v60, %v69
    %vm71 = vcmp.eq.f32.partialorder %v60, inf
    %v72 = vsel %vm71, %v60, %v70
    %vm73 = vcmp.eq.f32.partialorder %v60, 0.0
    %v74 = vand.u32 %v60, 2147483648
    %v75 = vsel %vm73, %v74, %v72
    %v76 = vrsqrt.pop %v63
    %v77 = vmul.f32 %v76, %v63
    %v78 = vmul.f32 %v77, %v76
    %v79 = vmul.f32 0.5, %v78
    %v80 = vsub.f32 1.5, %v79
    %v81 = vmul.f32 %v76, %v80
    %v82 = vmul.f32 %v63, %v81
    %vm83 = vcmp.eq.f32.partialorder %v63, inf
    %v84 = vsel %vm83, %v63, %v82
    %vm85 = vcmp.eq.f32.partialorder %v63, 0.0
    %v86 = vand.u32 %v63, 2147483648
    %v87 = vsel %vm85, %v86, %v84
    %v88 = vlaneseq
    %v89 = vshrl.u32 %v88, 7
    %v90 = vadd.s32 %v89, 8
    %s91 = smul.u32 0, 16
    %v92 = vstv %s91
    %v93 = vadd.s32 %v92, %v89
    %v94 = vadd.s32 %v92, %v90
    %vm95 = vcmp.lt.s32.totalorder %v93, 10
    %vm96 = vcmp.lt.s32.totalorder %v94, 10
    %v97 = vsel %vm95, 1, 0
    %v98 = vsel %vm96, 1, 0
    %v99 = vcvt.s32.f32 %v97
    %v100 = vcvt.s32.f32 %v98
    %v101 = vmul.f32 %v39, %v99
    %v102 = vmul.f32 %v40, %v100
    %vm103 = vcmask 7168
    %v104 = vsel %vm103, %v101, 0.0
    %v105 = vsel %vm103, %v102, 0.0
    %v106 = vadd.f32 %v104, %v105
    %107 = vadd.xlane.f32.xlu0 %v106
    %v108 = vpop.xlane.xlu0 %107
    %v109 = vrot.slane %v108, 4
    %v110 = vadd.f32 %v108, %v109
    %v111 = vrot.slane %v110, 2
    %v112 = vadd.f32 %v110, %v111
    %v113 = vrot.slane %v112, 1
    %v114 = vadd.f32 %v112, %v113
    %s115 = vtos %v114
    %v116 = vmul.f32 %v75, %v101
    %v117 = vmul.f32 %v87, %v102
    %v118 = vmax.f32 %v116, 1e-12
    %v119 = vmax.f32 %v117, 1e-12
    %v120 = vmin.f32 %v118, 1e+12
    %v121 = vmin.f32 %v119, 1e+12
    %v122 = vmul.f32 %v120, %v99
    %v123 = vmul.f32 %v121, %v100
    %v124 = vsel %vm103, %v122, 0.0
    %v125 = vsel %vm103, %v123, 0.0
    %v126 = vadd.f32 %v124, %v125
    %127 = vadd.xlane.f32.xlu0 %v126
    %v128 = vpop.xlane.xlu0 %127
    %v129 = vrot.slane %v128, 4
    %v130 = vadd.f32 %v128, %v129
    %v131 = vrot.slane %v130, 2
    %v132 = vadd.f32 %v130, %v131
    %v133 = vrot.slane %v132, 1
    %v134 = vadd.f32 %v132, %v133
    %s135 = vtos %v134
    %v136 = vsub.f32 1.0, %v101
    %v137 = vsub.f32 1.0, %v102
    %v138 = vmul.f32 %v75, %v136
    %v139 = vmul.f32 %v87, %v137
    %v140 = vmax.f32 %v138, 1e-12
    %v141 = vmax.f32 %v139, 1e-12
    %v142 = vmin.f32 %v140, 1e+12
    %v143 = vmin.f32 %v141, 1e+12
    %v144 = vmul.f32 %v142, %v99
    %v145 = vmul.f32 %v143, %v100
    %v146 = vsel %vm103, %v144, 0.0
    %v147 = vsel %vm103, %v145, 0.0
    %v148 = vadd.f32 %v146, %v147
    %149 = vadd.xlane.f32.xlu0 %v148
    %v150 = vpop.xlane.xlu0 %149
    %v151 = vrot.slane %v150, 4
    %v152 = vadd.f32 %v150, %v151
    %v153 = vrot.slane %v152, 2
    %v154 = vadd.f32 %v152, %v153
    %v155 = vrot.slane %v154, 1
    %v156 = vadd.f32 %v154, %v155
    %s157 = vtos %v156
    %v158 = vlaneseq
    %v159 = vand.u32 %v158, 127
    %vm160 = vcmp.eq.s32.totalorder %v159, 0
    %v161 = vstv %s115
    %v162 = vsel %vm160, %v161, 0.0
    %vm163 = vcmp.eq.s32.totalorder %v159, 1
    %v164 = vstv %s135
    %v165 = vsel %vm163, %v164, 0.0
    %v166 = vadd.f32 %v162, %v165
    %vm167 = vcmp.eq.s32.totalorder %v159, 2
    %v168 = vstv %s157
    %v169 = vsel %vm167, %v168, 0.0
    %v170 = vadd.f32 %v166, %v169
    %171 = vst [vmem:[#allocation6] sm:$0xff] %v170
    // Predicated region
    $region18: #{tpu_custom_call.1} parent=1 // pred_check
      _
    $region19: #{tpu_custom_call.1} parent=1 // pred_check_branch
      %173 = sbr.rel (0) target = $region21
    $region20: #{tpu_custom_call.1} parent=1 // pred_region
      %175 = vsyncadd [#allocation4], 0
      %s176 = sshll.u32 [#allocation5], 4
      %s177 = int_to_ptr.vmem [resolvable:$true] %s176
      %s178 = sshll.u32 %s3, 4
      %s179 = int_to_ptr.hbm [resolvable:$true] %s178
      %184 = dma.vmem_to_hbm [thread:$0]  %s177, 512, %s179, [#allocation4], 256, 256, 16
    $region21: #{tpu_custom_call.1} parent=1 // pred_fallthru
      _
    // Predicated region
    $region22: #{tpu_custom_call.1} parent=1 // pred_check
      _
    $region23: #{tpu_custom_call.1} parent=1 // pred_check_branch
      %186 = sbr.rel (0) target = $region25
    $region24: #{tpu_custom_call.1} parent=1 // pred_region
      %188 = vsyncadd [#allocation7], 0
      %s190 = sshll.u32 [#allocation6], 4
      %s191 = int_to_ptr.vmem [resolvable:$true] %s190
      %s192 = sshll.u32 %s4, 4
      %s193 = int_to_ptr.hbm [resolvable:$true] %s192
      %195 = dma.vmem_to_hbm [thread:$0]  %s191, 128, %s193, [#allocation7]
    $region25: #{tpu_custom_call.1} parent=1 // pred_fallthru
      _
    // Predicated region
    $region26: #{tpu_custom_call.1} parent=1 // pred_check
      _
    $region27: #{tpu_custom_call.1} parent=1 // pred_check_branch
      %197 = sbr.rel (0) target = $region29
    $region28: #{tpu_custom_call.1} parent=1 // pred_region
      %199 = dma.done [#allocation4], 512
    $region29: #{tpu_custom_call.1} parent=1 // pred_fallthru
      _
    // Predicated region
    $region30: #{tpu_custom_call.1} parent=1 // pred_check
      _
    $region31: #{tpu_custom_call.1} parent=1 // pred_check_branch
      %201 = sbr.rel (0) target = $region33
    $region32: #{tpu_custom_call.1} parent=1 // pred_region
      %203 = dma.done [#allocation7], 128
    $region33: #{tpu_custom_call.1} parent=1 // pred_fallthru
      _
    %204 = vsyncpa [#allocation3], 1
    %205 = vsyncpa [#allocation4], 1
    %206 = vsyncpa [#allocation7], 1

</llo_original>
